<compile_context>
chip_gen: v7x
topology: tpu7x:2x2x1
jax: 0.10.0
libtpu: 0.0.40
codegen_flags: <defaults>
</compile_context>

<pallas_src>
import functools

import jax
import jax.numpy as jnp
from jax.experimental import pallas as pl
from jax.experimental.pallas import tpu as pltpu


def _clipped_relu_kernel(alpha_ref, x_ref, o_ref, *, num_bits, dequantize):
    # alpha_ref: scalar-prefetch SMEM ref of shape (1,)
    alpha = alpha_ref[0]

    # Quantizer params: computed once as scalars (zero_point = scale * 0 = 0).
    n_levels = jnp.float32(2.0 ** num_bits - 1.0)
    scale = n_levels / alpha
    inv_scale = 1.0 / scale  # exact scalar reciprocal, computed once

    x = x_ref[...]
    x = jnp.maximum(x, 0.0)       # ReLU
    x = jnp.minimum(x, alpha)     # clip at alpha
    q = jnp.round(x * scale)      # STE forward: round(scale*x - zero_point)

    if dequantize:
        o_ref[...] = (q * inv_scale).astype(o_ref.dtype)
    else:
        # PyTorch returns a float tensor of rounded levels here; emitting int8
        # would cut write bandwidth 4x if a consumer can accept integers.
        o_ref[...] = q.astype(o_ref.dtype)


def clipped_relu(x, alpha, *, num_bits=4, dequantize=True,
                 tile_bytes=2 * 1024 * 1024):
    """ClippedReLU forward. x: float array (any shape), alpha: python/0-d scalar > 0."""
    orig_shape = x.shape
    orig_dtype = x.dtype
    total = x.size
    itemsize = jnp.dtype(orig_dtype).itemsize

    LANE, SUB = 128, 8

    # Flatten; pad only if the element count is not a multiple of 128.
    pad = (-total) % LANE
    padded_total = total + pad
    x_flat = x.reshape(-1)
    if pad:
        x_flat = jnp.pad(x_flat, (0, pad))

    # Widen the lane-dense last dim when it divides evenly (fewer DMA/store
    # descriptors per block; 128 is the minimum unmasked width).
    width = LANE
    for cand in (1024, 512, 256):
        if padded_total % cand == 0:
            width = cand
            break
    rows = padded_total // width
    x2d = x_flat.reshape(rows, width)

    # ~2 MiB tiles (f32): with input+output double-buffered this is ~8 MiB of
    # VMEM, safe on v5e/v6e/v7x default scoped limits, yet large enough to
    # amortize per-grid-step overhead against the HBM stream.
    tile_r = max(SUB, (tile_bytes // (width * itemsize)) // SUB * SUB)
    if rows <= tile_r:
        tile_r = rows  # single full-array block (exempt from (8,128) divisibility)
    grid = pl.cdiv(rows, tile_r)

    kernel = functools.partial(
        _clipped_relu_kernel, num_bits=num_bits, dequantize=dequantize
    )

    alpha_arr = jnp.asarray(alpha, jnp.float32).reshape(1)

    out2d = pl.pallas_call(
        kernel,
        out_shape=jax.ShapeDtypeStruct((rows, width), orig_dtype),
        grid_spec=pltpu.PrefetchScalarGridSpec(
            num_scalar_prefetch=1,                 # alpha -> SMEM
            grid=(grid,),
            in_specs=[pl.BlockSpec((tile_r, width), lambda i, a: (i, 0))],
            out_specs=pl.BlockSpec((tile_r, width), lambda i, a: (i, 0)),
        ),
        compiler_params=pltpu.CompilerParams(
            dimension_semantics=("parallel",),     # independent blocks -> megacore on v7x
        ),
        cost_estimate=pl.CostEstimate(
            flops=5 * padded_total,
            transcendentals=0,
            bytes_accessed=2 * itemsize * padded_total,
        ),
    )(alpha_arr, x2d)

    out = out2d.reshape(-1)
    if pad:
        out = out[:total]
    return out.reshape(orig_shape)


def clipped_relu_ref(x, alpha, *, num_bits=4, dequantize=True):
    """Pure-JAX reference of the same forward pass."""
    x = jnp.minimum(jnp.maximum(x, 0.0), alpha)
    scale = (2.0 ** num_bits - 1.0) / alpha
    q = jnp.round(x * scale)
    return q / scale if dequantize else q


if __name__ == "__main__":
    # Deterministic parameter init (module __init__: alpha = Parameter([8.0]))
    NUM_BITS = 4
    ALPHA = 8.0

    key = jax.random.PRNGKey(0)
    # Example NCHW activation, scaled so values span below 0 and above alpha.
    x = jax.random.normal(key, (2, 4, 16, 16), dtype=jnp.float32) * 6.0

    out = clipped_relu(x, ALPHA, num_bits=NUM_BITS, dequantize=True)
    out = jax.block_until_ready(out)

    ref = clipped_relu_ref(x, ALPHA, num_bits=NUM_BITS, dequantize=True)
    assert out.shape == x.shape and out.dtype == x.dtype
    assert jnp.allclose(out, ref, atol=1e-5, rtol=1e-6), "mismatch vs reference"

    print("KERNEL_OK")
</pallas_src>

<mosaic_0001>
module attributes {stable_mosaic.version = 11 : i64} {
  func.func @_clipped_relu_kernel(%arg0: i32, %arg1: memref<1xf32, #tpu.memory_space<smem>>, %arg2: memref<2x1024xf32, #tpu.memory_space<vmem>>, %arg3: memref<2x1024xf32, #tpu.memory_space<vmem>>) attributes {dimension_semantics = [#tpu.dimension_semantics<parallel>], iteration_bounds = array<i64: 1>, scalar_prefetch = 1 : i64, scratch_operands = 0 : i64, tpu.core_type = #tpu.core_type<tc>, window_params = [{transform_indices = @transform_0, window_bounds = array<i64: 2, 1024>}, {transform_indices = @transform_1, window_bounds = array<i64: 2, 1024>}]} {
    %c0 = arith.constant 0 : index
    %0 = memref.load %arg1[%c0] : memref<1xf32, #tpu.memory_space<smem>>
    %cst = arith.constant 1.500000e+01 : f32
    %1 = arith.divf %cst, %0 : f32
    %cst_0 = arith.constant 1.000000e+00 : f32
    %2 = arith.divf %cst_0, %1 : f32
    %c0_1 = arith.constant 0 : index
    %c0_2 = arith.constant 0 : index
    %3 = vector.load %arg2[%c0_1, %c0_2] : memref<2x1024xf32, #tpu.memory_space<vmem>>, vector<2x1024xf32>
    %cst_3 = arith.constant 0.000000e+00 : f32
    %4 = vector.broadcast %cst_3 : f32 to vector<2x1024xf32>
    %5 = arith.maximumf %3, %4 : vector<2x1024xf32>
    %6 = vector.broadcast %0 : f32 to vector<2x1024xf32>
    %7 = arith.minimumf %5, %6 : vector<2x1024xf32>
    %8 = vector.broadcast %1 : f32 to vector<2x1024xf32>
    %9 = arith.mulf %7, %8 : vector<2x1024xf32>
    %10 = math.roundeven %9 : vector<2x1024xf32>
    %11 = vector.broadcast %2 : f32 to vector<2x1024xf32>
    %12 = arith.mulf %10, %11 : vector<2x1024xf32>
    %c0_4 = arith.constant 0 : index
    %c0_5 = arith.constant 0 : index
    %13 = vector.load %arg3[%c0_4, %c0_5] : memref<2x1024xf32, #tpu.memory_space<vmem>>, vector<2x1024xf32>
    tpu.vector_store %arg3[%c0_4, %c0_5], %12 {strides = array<i32>} : memref<2x1024xf32, #tpu.memory_space<vmem>>, vector<2x1024xf32>,
    return
  }
  func.func @transform_0(%arg0: i32, %arg1: memref<1xf32, #tpu.memory_space<smem>>) -> (i32, i32) {
    %c0_i32 = arith.constant 0 : i32
    %c0_i32_0 = arith.constant 0 : i32
    return %arg0, %c0_i32 : i32, i32
  }
  func.func @transform_1(%arg0: i32, %arg1: memref<1xf32, #tpu.memory_space<smem>>) -> (i32, i32) {
    %c0_i32 = arith.constant 0 : i32
    %c0_i32_0 = arith.constant 0 : i32
    return %arg0, %c0_i32 : i32, i32
  }
}

</mosaic_0001>

<llo_original>
// kernel: tpu_custom_call.1
$region0: #{tpu_custom_call.1}
  #allocation0 [shape = 'u32[]', space=smem, size = 0x4, offset = 0x4, fixed_abs, tag = 'smem constant byte address 0x4 - core index']
  #allocation1 [shape = 'u32[144,128]{1,0:T(1,128)}', space=vmem, size = 0x12000, scoped, tag = 'internal scratch']
  #allocation2 [shape = 's32[1]{0}', space=sflag, size = 0x4, scoped, tag = 'scoped memory for tpu_custom_call.1']
  #allocation3 [shape = 'f32[1]{0:T(128)S(6)}', space=smem, size = 0x200, scoped, tag = 'prefetched SMEM operand 0']
  %s0 = inlined_call_operand.<no memory space> [shape: f32[1], index: 0, kind: input, shape index: {}]
  %s1 = inlined_call_operand.hbm [shape: f32[2,1024], index: 1, kind: input, shape index: {}]
  %s2 = inlined_call_operand.hbm [shape: f32[2,1024], index: 2, kind: output, shape index: {}]
  %s3 = sld [smem:[#allocation0]]
  $region18: #{tpu_custom_call.1} parent=0
    _
  %s5 = ssub.s32 1, %s3
  %s6 = scalar_select 0, %s5, %s3
  %7 = sst [smem:[#allocation3]] %s0
  $region1: #{tpu_custom_call.1} parent=0
    #allocation4 [shape = 'u8[8192]{0}', space=vmem, size = 0x2000, scoped, tag = 'input window, operand 1, single buffered']
    #allocation5 [shape = 's32[1]{0}', space=sflag, size = 0x4, scoped, tag = 'scoped memory for tpu_custom_call.1']
    #allocation6 [shape = 's32[1]{0}', space=sflag, size = 0x4, scoped, tag = 'scoped memory for tpu_custom_call.1']
    #allocation7 [shape = 'u8[8192]{0}', space=vmem, size = 0x2000, scoped, tag = 'output window, operand 0, single buffered']
    %8 = vsyncpa [#allocation5], 0
    %9 = vsyncpa [#allocation6], 0
    // Predicated region
    $region2: #{tpu_custom_call.1} parent=1 // pred_check
      _
    $region3: #{tpu_custom_call.1} parent=1 // pred_check_branch
      %11 = sbr.rel (0) target = $region5
    $region4: #{tpu_custom_call.1} parent=1 // pred_region
      %s13 = ssub.s32 256, 256
      %14 = vsyncadd [#allocation5], %s13
      %s16 = sshll.u32 [#allocation4], 4
      %s17 = int_to_ptr.vmem [resolvable:$true] %s16
      %19 = dma.hbm_to_vmem [thread:$0]  %s1, 256, %s17, [#allocation5]
    $region5: #{tpu_custom_call.1} parent=1 // pred_fallthru
      _
    // Predicated region
    $region6: #{tpu_custom_call.1} parent=1 // pred_check
      _
    $region7: #{tpu_custom_call.1} parent=1 // pred_check_branch
      %21 = sbr.rel (0) target = $region9
    $region8: #{tpu_custom_call.1} parent=1 // pred_region
      %22 = dma.done [#allocation5], 256
    $region9: #{tpu_custom_call.1} parent=1 // pred_fallthru
      _
    %s23 = sld [smem:[#allocation3]]
    %v24 = vstv %s23
    %v25 = vrcp.pop %v24
    %s26 = vtos %v25
    %s27 = smul.f32 15.0, %s26
    %v28 = vstv %s27
    %v29 = vrcp.pop %v28
    %s30 = vtos %v29
    %v31 = vld [vmem:[#allocation4] sm:$0xff]
    %v32 = vld [vmem:[#allocation4 + $0x8] sm:$0xff]
    %v33 = vmax.f32 %v31, 0.0
    %v34 = vmax.f32 %v32, 0.0
    %v35 = vstv %s23
    %v36 = vmin.f32 %v33, %v35
    %v37 = vmin.f32 %v34, %v35
    %v38 = vstv %s27
    %v39 = vmul.f32 %v36, %v38
    %v40 = vmul.f32 %v37, %v38
    %v41 = vround.ne.pseudo %v39
    %v42 = vround.ne.pseudo %v40
    %v43 = vstv %s30
    %v44 = vmul.f32 %v41, %v43
    %v45 = vmul.f32 %v42, %v43
    %46 = vst [vmem:[#allocation7] sm:$0xff] %v44
    %47 = vst [vmem:[#allocation7 + $0x8] sm:$0xff] %v45
    // Predicated region
    $region10: #{tpu_custom_call.1} parent=1 // pred_check
      _
    $region11: #{tpu_custom_call.1} parent=1 // pred_check_branch
      %49 = sbr.rel (0) target = $region13
    $region12: #{tpu_custom_call.1} parent=1 // pred_region
      %s51 = ssub.s32 256, 256
      %52 = vsyncadd [#allocation6], %s51
      %s54 = sshll.u32 [#allocation7], 4
      %s55 = int_to_ptr.vmem [resolvable:$true] %s54
      %57 = dma.vmem_to_hbm [thread:$0]  %s55, 256, %s2, [#allocation6]
    $region13: #{tpu_custom_call.1} parent=1 // pred_fallthru
      _
    // Predicated region
    $region14: #{tpu_custom_call.1} parent=1 // pred_check
      _
    $region15: #{tpu_custom_call.1} parent=1 // pred_check_branch
      %59 = sbr.rel (0) target = $region17
    $region16: #{tpu_custom_call.1} parent=1 // pred_region
      %60 = dma.done [#allocation6], 256
    $region17: #{tpu_custom_call.1} parent=1 // pred_fallthru
      _
    %61 = vsyncpa [#allocation5], 1
    %62 = vsyncpa [#allocation6], 1

</llo_original>
